<compile_context>
chip_gen: v7x
topology: tpu7x:2x2x1
jax: 0.10.0
libtpu: 0.0.40
codegen_flags: <defaults>
</compile_context>

<pallas_src>
import numpy as np
import jax
import jax.numpy as jnp
from jax.experimental import pallas as pl
from jax.experimental.pallas import tpu as pltpu


def get_exp_weights(decay_rate: float, num_timesteps: int):
    timesteps = np.arange(num_timesteps)
    return np.exp(-decay_rate * timesteps)


def _round_up(x: int, m: int) -> int:
    return ((x + m - 1) // m) * m


def _multistep_mse_block_kernel(y_ref, d_ref, nscale_ref, w_ref, tidx_ref, out_ref):
    # y_ref, d_ref : (TB, T*D)   streamed input blocks (native dtype)
    # nscale_ref   : (TB, 2)     f32: col 0 = n_i, col 1 = 1/n_i (0 for padding)
    # w_ref        : (1, T*D)    norm_loss_wghts tiled along time (resident)
    # tidx_ref     : (1, T*D)    f32 time index per flattened column (resident)
    # out_ref      : (1, 1, 1)   per-block partial sum of (1/n_i)*w_d*diff^2
    n = nscale_ref[:, 0:1]                                    # (TB, 1)
    inv_n = nscale_ref[:, 1:2]                                # (TB, 1)
    # Validity mask with 1/n folded in -> single fused VPU multiply chain.
    scale = jnp.where(tidx_ref[...] < n, inv_n, 0.0)          # (TB, T*D)

    diff = y_ref[...].astype(jnp.float32) - d_ref[...].astype(jnp.float32)
    sq = diff * diff * (w_ref[...] * scale)                   # (TB, T*D)

    # Two-stage reduce (per-sample row sums first) for better numerics.
    row = jnp.sum(sq, axis=1, keepdims=True)                  # (TB, 1)
    out_ref[...] = jnp.broadcast_to(jnp.sum(row), (1, 1, 1))


class MultiStepMSELoss:
    """JAX/Pallas port of the PyTorch MultiStepMSELoss module (jit-able)."""

    def __init__(self):
        # As in the PyTorch __init__ (unused in forward, kept for fidelity).
        self.loss_weights = jnp.asarray(
            get_exp_weights(decay_rate=0.9, num_timesteps=50), dtype=jnp.float32
        )

    def __call__(self, y_pred, delta_batch, break_steps, params):
        B, T, D = y_pred.shape
        TD = T * D

        # Lane-dense flattening (row-major => column j has t = j // D, d = j % D).
        y_flat = y_pred.reshape(B, TD)
        d_flat = delta_batch.reshape(B, TD)

        # Precompute n and 1/n on device (no per-block int clip / divide).
        brk = jnp.asarray(break_steps, dtype=jnp.int32).reshape(B)
        n = jnp.clip(brk + 1, 1, T).astype(jnp.float32)
        nscale = jnp.stack([n, 1.0 / n], axis=1)                       # (B, 2)

        # Resident per-column weight row and time-index row (built on device).
        w = jnp.asarray(params["norm_loss_wghts"], dtype=jnp.float32).reshape(1, 1, D)
        w_flat = jnp.broadcast_to(w, (1, T, D)).reshape(1, TD)
        t_idx = jax.lax.broadcasted_iota(jnp.float32, (1, T, D), 1).reshape(1, TD)

        # ---- Block sizing from an explicit VMEM budget ------------------
        itemsize = jnp.dtype(y_pred.dtype).itemsize
        target_block_bytes = 4 * 1024 * 1024            # per streamed input block
        tb = max(8, target_block_bytes // max(1, TD * itemsize))
        tb = min(tb, _round_up(B, 8))
        tb = _round_up(tb, 8)
        # Guarantee >= 2 grid steps when B allows so "parallel" shards across
        # both v7x TensorCores.
        if B > 8 and -(-B // tb) < 2:
            tb = _round_up(-(-B // 2), 8)
        b_pad = _round_up(B, tb)
        grid = b_pad // tb

        if b_pad != B:
            pad = ((0, b_pad - B), (0, 0))
            # Padded samples: diff == 0 and n == 0 (mask all-false) -> contribute 0.
            y_flat = jnp.pad(y_flat, pad)
            d_flat = jnp.pad(d_flat, pad)
            nscale = jnp.pad(nscale, pad)

        # VMEM working-set estimate (double-buffered), incl. the lane-padded
        # (tb, 2) aux block and f32 upcast temporaries.
        td_pad = _round_up(TD, 128)
        tb_pad = _round_up(tb, 8)
        in_block = tb_pad * td_pad * itemsize
        aux_block = tb_pad * 128 * 4
        resident = 2 * 8 * td_pad * 4
        upcast_scratch = 2 * tb_pad * td_pad * 4
        budget = 2 * (2 * in_block + aux_block + resident) + upcast_scratch
        vmem_limit = int(min(64 << 20, max(budget + (8 << 20), 32 << 20)))

        partials = pl.pallas_call(
            _multistep_mse_block_kernel,
            grid=(grid,),
            in_specs=[
                pl.BlockSpec((tb, TD), lambda g: (g, 0)),   # y_pred block
                pl.BlockSpec((tb, TD), lambda g: (g, 0)),   # delta block
                pl.BlockSpec((tb, 2), lambda g: (g, 0)),    # n / 1/n block
                pl.BlockSpec((1, TD), lambda g: (0, 0)),    # weights (resident)
                pl.BlockSpec((1, TD), lambda g: (0, 0)),    # time index (resident)
            ],
            out_specs=pl.BlockSpec((1, 1, 1), lambda g: (g, 0, 0)),
            out_shape=jax.ShapeDtypeStruct((grid, 1, 1), jnp.float32),
            compiler_params=pltpu.CompilerParams(
                dimension_semantics=("parallel",),
                vmem_limit_bytes=vmem_limit,
            ),
        )(y_flat, d_flat, nscale, w_flat, t_idx)

        # Final reduction (cheap) in plain JAX: mean over batch and features.
        return jnp.sum(partials) / jnp.float32(B * D)


def _reference(y, d, bs, w):
    losses = []
    for i in range(y.shape[0]):
        n = int(bs[i]) + 1
        diff = np.asarray(y[i, :n, :], np.float32) - np.asarray(d[i, :n, :], np.float32)
        per_dim = np.mean(diff ** 2, axis=0)
        losses.append(np.mean(np.asarray(w, np.float32) * per_dim))
    return np.mean(losses)


if __name__ == "__main__":
    loss_fn = MultiStepMSELoss()
    key = jax.random.PRNGKey(0)

    # Config 1: tiny shapes, single grid step, run under jax.jit.
    B, T, D = 2, 8, 32
    k1, k2, k3, k4 = jax.random.split(key, 4)
    y_pred = jax.random.normal(k1, (B, T, D), dtype=jnp.float32)
    delta_batch = jax.random.normal(k2, (B, T, D), dtype=jnp.float32)
    break_steps = jax.random.randint(k3, (B,), 0, T, dtype=jnp.int32)
    norm_loss_wghts = jax.random.uniform(k4, (D,), dtype=jnp.float32) + 0.5

    jitted = jax.jit(
        lambda y, d, b, w: loss_fn(y, d, b, {"norm_loss_wghts": w})
    )
    loss = jax.block_until_ready(jitted(y_pred, delta_batch, break_steps,
                                        norm_loss_wghts))
    ref = _reference(np.asarray(y_pred), np.asarray(delta_batch),
                     np.asarray(break_steps), np.asarray(norm_loss_wghts))
    assert np.allclose(np.asarray(loss), ref, rtol=1e-5, atol=1e-6), (loss, ref)

    # Config 2: larger batch -> multiple grid steps + batch padding exercised.
    B2 = 12
    k5, k6, k7 = jax.random.split(k4, 3)
    y2 = jax.random.normal(k5, (B2, T, D), dtype=jnp.float32)
    d2 = jax.random.normal(k6, (B2, T, D), dtype=jnp.float32)
    bs2 = jax.random.randint(k7, (B2,), 0, T, dtype=jnp.int32)
    loss2 = jax.block_until_ready(
        loss_fn(y2, d2, bs2, {"norm_loss_wghts": norm_loss_wghts})
    )
    ref2 = _reference(np.asarray(y2), np.asarray(d2), np.asarray(bs2),
                      np.asarray(norm_loss_wghts))
    assert np.allclose(np.asarray(loss2), ref2, rtol=1e-5, atol=1e-6), (loss2, ref2)

    print("KERNEL_OK")
</pallas_src>

<mosaic_0001>
module attributes {stable_mosaic.version = 11 : i64} {
  func.func @_multistep_mse_block_kernel(%arg0: i32, %arg1: memref<8x256xf32, #tpu.memory_space<vmem>>, %arg2: memref<8x256xf32, #tpu.memory_space<vmem>>, %arg3: memref<8x2xf32, #tpu.memory_space<vmem>>, %arg4: memref<1x256xf32, #tpu.memory_space<vmem>>, %arg5: memref<1x256xf32, #tpu.memory_space<vmem>>, %arg6: memref<1x1x1xf32, #tpu.memory_space<vmem>>) attributes {dimension_semantics = [#tpu.dimension_semantics<parallel>], iteration_bounds = array<i64: 1>, scalar_prefetch = 0 : i64, scratch_operands = 0 : i64, tpu.core_type = #tpu.core_type<tc>, window_params = [{transform_indices = @transform_0, window_bounds = array<i64: 8, 256>}, {transform_indices = @transform_1, window_bounds = array<i64: 8, 256>}, {transform_indices = @transform_2, window_bounds = array<i64: 8, 2>}, {pipeline_mode = #tpu.pipeline_mode<synchronous>, transform_indices = @transform_3, window_bounds = array<i64: 1, 256>}, {pipeline_mode = #tpu.pipeline_mode<synchronous>, transform_indices = @transform_4, window_bounds = array<i64: 1, 256>}, {transform_indices = @transform_5, window_bounds = array<i64: 1, 1, 1>}]} {
    %c0 = arith.constant 0 : index
    %c0_0 = arith.constant 0 : index
    %0 = vector.load %arg3[%c0, %c0_0] : memref<8x2xf32, #tpu.memory_space<vmem>>, vector<8x1xf32>
    %c0_1 = arith.constant 0 : index
    %c1 = arith.constant 1 : index
    %1 = vector.load %arg3[%c0_1, %c1] : memref<8x2xf32, #tpu.memory_space<vmem>>, vector<8x1xf32>
    %c0_2 = arith.constant 0 : index
    %c0_3 = arith.constant 0 : index
    %2 = vector.load %arg5[%c0_2, %c0_3] : memref<1x256xf32, #tpu.memory_space<vmem>>, vector<1x256xf32>
    %3 = vector.broadcast %2 : vector<1x256xf32> to vector<8x256xf32>
    %4 = vector.broadcast %0 : vector<8x1xf32> to vector<8x256xf32>
    %5 = arith.cmpf olt, %3, %4 : vector<8x256xf32>
    %cst = arith.constant 0.000000e+00 : f32
    %6 = vector.shape_cast %1 : vector<8x1xf32> to vector<8x1xf32>
    %7 = vector.broadcast %6 : vector<8x1xf32> to vector<8x256xf32>
    %8 = vector.broadcast %cst : f32 to vector<8x256xf32>
    %9 = arith.select %5, %7, %8 : vector<8x256xi1>, vector<8x256xf32>
    %c0_4 = arith.constant 0 : index
    %c0_5 = arith.constant 0 : index
    %10 = vector.load %arg1[%c0_4, %c0_5] : memref<8x256xf32, #tpu.memory_space<vmem>>, vector<8x256xf32>
    %c0_6 = arith.constant 0 : index
    %c0_7 = arith.constant 0 : index
    %11 = vector.load %arg2[%c0_6, %c0_7] : memref<8x256xf32, #tpu.memory_space<vmem>>, vector<8x256xf32>
    %12 = arith.subf %10, %11 : vector<8x256xf32>
    %13 = arith.mulf %12, %12 : vector<8x256xf32>
    %c0_8 = arith.constant 0 : index
    %c0_9 = arith.constant 0 : index
    %14 = vector.load %arg4[%c0_8, %c0_9] : memref<1x256xf32, #tpu.memory_space<vmem>>, vector<1x256xf32>
    %15 = vector.broadcast %14 : vector<1x256xf32> to vector<8x256xf32>
    %16 = arith.mulf %15, %9 : vector<8x256xf32>
    %17 = arith.mulf %13, %16 : vector<8x256xf32>
    %cst_10 = arith.constant dense<0.000000e+00> : vector<8xf32>
    %18 = vector.multi_reduction <add>, %17, %cst_10 [1] : vector<8x256xf32> to vector<8xf32>
    %19 = vector.shape_cast %18 : vector<8xf32> to vector<8x1xf32>
    %20 = vector.shape_cast %19 : vector<8x1xf32> to vector<1x8x1xf32>
    %cst_11 = arith.constant dense<0.000000e+00> : vector<1xf32>
    %21 = vector.multi_reduction <add>, %20, %cst_11 [1, 2] : vector<1x8x1xf32> to vector<1xf32>
    %22 = vector.shape_cast %21 : vector<1xf32> to vector<1x1x1xf32>
    %23 = vector.extract %22[0, 0, 0] : f32 from vector<1x1x1xf32>
    %24 = vector.broadcast %23 : f32 to vector<1x1x1xf32>
    %c0_12 = arith.constant 0 : index
    %c0_13 = arith.constant 0 : index
    %c0_14 = arith.constant 0 : index
    %25 = vector.load %arg6[%c0_12, %c0_13, %c0_14] : memref<1x1x1xf32, #tpu.memory_space<vmem>>, vector<1x1x1xf32>
    tpu.vector_store %arg6[%c0_12, %c0_13, %c0_14], %24 {strides = array<i32>} : memref<1x1x1xf32, #tpu.memory_space<vmem>>, vector<1x1x1xf32>,
    return
  }
  func.func @transform_0(%arg0: i32) -> (i32, i32) {
    %c0_i32 = arith.constant 0 : i32
    %c0_i32_0 = arith.constant 0 : i32
    return %arg0, %c0_i32 : i32, i32
  }
  func.func @transform_1(%arg0: i32) -> (i32, i32) {
    %c0_i32 = arith.constant 0 : i32
    %c0_i32_0 = arith.constant 0 : i32
    return %arg0, %c0_i32 : i32, i32
  }
  func.func @transform_2(%arg0: i32) -> (i32, i32) {
    %c0_i32 = arith.constant 0 : i32
    %c0_i32_0 = arith.constant 0 : i32
    return %arg0, %c0_i32 : i32, i32
  }
  func.func @transform_3(%arg0: i32) -> (i32, i32) {
    %c0_i32 = arith.constant 0 : i32
    %c0_i32_0 = arith.constant 0 : i32
    %c0_i32_1 = arith.constant 0 : i32
    return %c0_i32, %c0_i32_0 : i32, i32
  }
  func.func @transform_4(%arg0: i32) -> (i32, i32) {
    %c0_i32 = arith.constant 0 : i32
    %c0_i32_0 = arith.constant 0 : i32
    %c0_i32_1 = arith.constant 0 : i32
    return %c0_i32, %c0_i32_0 : i32, i32
  }
  func.func @transform_5(%arg0: i32) -> (i32, i32, i32) {
    %c0_i32 = arith.constant 0 : i32
    %c0_i32_0 = arith.constant 0 : i32
    %c0_i32_1 = arith.constant 0 : i32
    return %arg0, %c0_i32, %c0_i32_0 : i32, i32, i32
  }
}

</mosaic_0001>

<llo_original>
// kernel: _lambda_.1
$region0: #{_lambda_.1}
  #allocation0 [shape = 'u32[]', space=smem, size = 0x4, offset = 0x4, fixed_abs, tag = 'smem constant byte address 0x4 - core index']
  #allocation1 [shape = 'u32[144,128]{1,0:T(1,128)}', space=vmem, size = 0x12000, scoped, tag = 'internal scratch']
  %s0 = inlined_call_operand.vmem [shape: f32[8,256], index: 0, kind: input, shape index: {}]
  %s1 = inlined_call_operand.vmem [shape: f32[8,256], index: 1, kind: input, shape index: {}]
  %s2 = inlined_call_operand.vmem [shape: f32[8,2], index: 2, kind: input, shape index: {}]
  %s3 = inlined_call_operand.vmem [shape: f32[1,256], index: 3, kind: input, shape index: {}]
  %s4 = inlined_call_operand.vmem [shape: f32[1,256], index: 4, kind: input, shape index: {}]
  %s5 = inlined_call_operand.hbm [shape: f32[1,1,1], index: 5, kind: output, shape index: {}]
  %s6 = sld [smem:[#allocation0]]
  $region30: #{_lambda_.1} parent=0
    _
  %s8 = ssub.s32 1, %s6
  %s9 = scalar_select 0, %s8, %s6
  $region1: #{_lambda_.1} parent=0
    #allocation2 [shape = 'u8[512]{0}', space=vmem, size = 0x400, scoped, tag = 'output window, operand 0, single buffered']
    #allocation3 [shape = 's32[1]{0}', space=sflag, size = 0x4, scoped, tag = 'scoped memory for _lambda_.1']
    %10 = vsyncpa [#allocation3], 0
    // Predicated region
    $region2: #{_lambda_.1} parent=1 // pred_check
      _
    $region3: #{_lambda_.1} parent=1 // pred_check_branch
      %12 = sbr.rel (0) target = $region5
    $region4: #{_lambda_.1} parent=1 // pred_region
      _
    $region5: #{_lambda_.1} parent=1 // pred_fallthru
      _
    // Predicated region
    $region6: #{_lambda_.1} parent=1 // pred_check
      _
    $region7: #{_lambda_.1} parent=1 // pred_check_branch
      %14 = sbr.rel (0) target = $region9
    $region8: #{_lambda_.1} parent=1 // pred_region
      _
    $region9: #{_lambda_.1} parent=1 // pred_fallthru
      _
    // Predicated region
    $region10: #{_lambda_.1} parent=1 // pred_check
      _
    $region11: #{_lambda_.1} parent=1 // pred_check_branch
      %16 = sbr.rel (0) target = $region13
    $region12: #{_lambda_.1} parent=1 // pred_region
      _
    $region13: #{_lambda_.1} parent=1 // pred_fallthru
      _
    // Predicated region
    $region14: #{_lambda_.1} parent=1 // pred_check
      _
    $region15: #{_lambda_.1} parent=1 // pred_check_branch
      %18 = sbr.rel (0) target = $region17
    $region16: #{_lambda_.1} parent=1 // pred_region
      _
    $region17: #{_lambda_.1} parent=1 // pred_fallthru
      _
    // Predicated region
    $region18: #{_lambda_.1} parent=1 // pred_check
      _
    $region19: #{_lambda_.1} parent=1 // pred_check_branch
      %20 = sbr.rel (0) target = $region21
    $region20: #{_lambda_.1} parent=1 // pred_region
      _
    $region21: #{_lambda_.1} parent=1 // pred_fallthru
      _
    %v21 = vld [vmem:[%s2] sm:$0xff]
    %v22 = vld [vmem:[%s4] sm:$0x3]
    %v24 = vlaneseq
    %v25 = vshrl.u32 %v24, 7
    %v26 = vsub.s32 0, %v25
    %v27 = vrot.slane %v22, %v26
    %v28 = vlaneseq
    %v29 = vshrl.u32 %v28, 7
    %v30 = vsub.s32 1, %v29
    %v31 = vrot.slane %v22, %v30
    %35 = vset.pattern.permute.xlu0 0
    %36 = vperm.xlu0 %35, %v21
    %v37 = vpop.permute.xlu0 %36
    %vm39 = vcmp.lt.f32.partialorder %v27, %v37
    %vm40 = vcmp.lt.f32.partialorder %v31, %v37
    %41 = vset.pattern.permute.xlu0 1
    %42 = vperm.xlu0 %41, %v21
    %v43 = vpop.permute.xlu0 %42
    %v45 = vsel %vm39, %v43, 0.0
    %v46 = vsel %vm40, %v43, 0.0
    %v47 = vld [vmem:[%s0] sm:$0xff]
    %v48 = vld [vmem:[%s0 + $0x8] sm:$0xff]
    %v49 = vld [vmem:[%s1] sm:$0xff]
    %v50 = vld [vmem:[%s1 + $0x8] sm:$0xff]
    %v51 = vsub.f32 %v47, %v49
    %v52 = vsub.f32 %v48, %v50
    %v53 = vmul.f32 %v51, %v51
    %v54 = vmul.f32 %v52, %v52
    %v55 = vld [vmem:[%s3] sm:$0x3]
    %v57 = vlaneseq
    %v58 = vshrl.u32 %v57, 7
    %v59 = vsub.s32 0, %v58
    %v60 = vrot.slane %v55, %v59
    %v61 = vlaneseq
    %v62 = vshrl.u32 %v61, 7
    %v63 = vsub.s32 1, %v62
    %v64 = vrot.slane %v55, %v63
    %v67 = vmul.f32 %v60, %v45
    %v68 = vmul.f32 %v64, %v46
    %v69 = vmul.f32 %v53, %v67
    %v70 = vmul.f32 %v54, %v68
    %v71 = vadd.f32 %v69, %v70
    %72 = vadd.xlane.f32.xlu0 %v71
    %v73 = vpop.xlane.xlu0 %72
    %vm74 = vcmask 7168
    %v75 = vsel %vm74, %v73, 0.0
    %76 = vadd.xlane.f32.xlu0 %v75
    %v77 = vpop.xlane.xlu0 %76
    %v78 = vrot.slane %v77, 4
    %v79 = vadd.f32 %v77, %v78
    %v80 = vrot.slane %v79, 2
    %v81 = vadd.f32 %v79, %v80
    %v82 = vrot.slane %v81, 1
    %v83 = vadd.f32 %v81, %v82
    %s84 = vtos %v83
    %v85 = vstv %s84
    %vm86 = vcmask 0
    %87 = vst.msk [vmem:[#allocation2] sm:$0x1] %vm86, %v85
    // Predicated region
    $region22: #{_lambda_.1} parent=1 // pred_check
      _
    $region23: #{_lambda_.1} parent=1 // pred_check_branch
      %89 = sbr.rel (0) target = $region25
    $region24: #{_lambda_.1} parent=1 // pred_region
      %s91 = ssub.s32 16, 16
      %92 = vsyncadd [#allocation3], %s91
      %s94 = sshll.u32 [#allocation2], 4
      %s95 = int_to_ptr.vmem [resolvable:$true] %s94
      %97 = dma.vmem_to_hbm [thread:$0]  %s95, 16, %s5, [#allocation3]
    $region25: #{_lambda_.1} parent=1 // pred_fallthru
      _
    // Predicated region
    $region26: #{_lambda_.1} parent=1 // pred_check
      _
    $region27: #{_lambda_.1} parent=1 // pred_check_branch
      %99 = sbr.rel (0) target = $region29
    $region28: #{_lambda_.1} parent=1 // pred_region
      %100 = dma.done [#allocation3], 16
    $region29: #{_lambda_.1} parent=1 // pred_fallthru
      _
    %101 = vsyncpa [#allocation3], 1

</llo_original>
